<compile_context>
chip_gen: v6e
topology: v6e:2x2x1
jax: 0.10.0
libtpu: 0.0.40
codegen_flags: <defaults>
</compile_context>

<pallas_src>
import functools

import jax
import jax.numpy as jnp
from jax import lax
from jax.experimental import pallas as pl
from jax.experimental.pallas import tpu as pltpu

_LANE = 128
_SUBLANE = 16                  # sublane alignment that works for f32 and bf16
_PALLAS_MIN_ELEMS = 1 << 17    # below this, XLA's fused elementwise+reduce wins
_MIN_ROWS_PER_SHARD = 64       # don't shard tiny inputs


def _round_up(x, m):
    return ((x + m - 1) // m) * m


@functools.lru_cache(maxsize=None)
def _tpu_config():
    """Return (num_tensorcores, max_tile_rows) for the local TPU generation."""
    kind = ""
    try:
        kind = jax.devices()[0].device_kind.lower()
    except Exception:
        pass
    num_cores = 1
    try:
        info = pltpu.get_tpu_info()
        for attr in ("num_cores", "num_tensorcores", "tensorcore_count",
                     "cores_per_chip"):
            v = getattr(info, attr, None)
            if isinstance(v, int) and 1 <= v <= 8:
                num_cores = v
                break
    except Exception:
        pass
    if num_cores == 1 and "v7" in kind:
        num_cores = 2  # v7x: two TensorCores per chip
    # 2048 rows = 1 MiB f32 blocks (4 inputs x 2 buffers = 8 MiB: fits every
    # generation's default scoped-VMEM); 4096 on v7x to match its 3.2 TB/s HBM.
    max_tile_rows = 4096 if "v7" in kind else 2048
    return num_cores, max_tile_rows


def _make_kernel(n, steps, tile_rows, needs_mask):
    """Kernel closure over the static problem geometry."""

    def kernel(mu_q_ref, sigma_q_ref, mu_p_ref, sigma_p_ref, out_ref):
        shard = pl.program_id(0)
        step = pl.program_id(1)

        @pl.when(step == 0)
        def _():
            out_ref[...] = jnp.zeros_like(out_ref)

        mu_q = mu_q_ref[...].astype(jnp.float32)
        mu_p = mu_p_ref[...].astype(jnp.float32)
        sq = sigma_q_ref[...].astype(jnp.float32)
        sp = sigma_p_ref[...].astype(jnp.float32)
        diff = mu_q - mu_p

        if needs_mask:
            # Zero the inputs past the logical end *before* the exps so any
            # garbage in the out-of-bounds overhang cannot reach them.
            base = (shard * steps + step) * (tile_rows * _LANE)
            idx = (base
                   + lax.broadcasted_iota(jnp.int32, (tile_rows, _LANE), 0) * _LANE
                   + lax.broadcasted_iota(jnp.int32, (tile_rows, _LANE), 1))
            valid = idx < n
            zero = jnp.float32(0.0)
            sq = jnp.where(valid, sq, zero)
            sp = jnp.where(valid, sp, zero)
            diff = jnp.where(valid, diff, zero)

        # Masked / zero-padded elements contribute 0.5*(0-0+exp(0)+0-1) == 0.
        kl = 0.5 * (sq - sp + jnp.exp(sp - sq)
                    + diff * diff * jnp.exp(-sq) - 1.0)

        # Sublane-only reduce per step; the resident (1, 128) output block is
        # the f32 accumulator across the "arbitrary" step axis.
        out_ref[...] += jnp.sum(kl, axis=0, keepdims=True)

    return kernel


def _kld_pallas(mu_q, sigma_q, mu_p, sigma_p):
    n = mu_q.shape[0]
    num_shards, max_tile_rows = _tpu_config()

    rows = _round_up(pl.cdiv(n, _LANE), _SUBLANE)
    if rows < num_shards * _MIN_ROWS_PER_SHARD:
        num_shards = 1

    # Rebalanced tiling: pick the step count first, then the tile size, so the
    # grid coverage overshoots the data by at most a 16-row sliver per block.
    rows_per_shard = pl.cdiv(rows, num_shards)
    steps = max(1, pl.cdiv(rows_per_shard, max_tile_rows))
    tile_rows = _round_up(pl.cdiv(rows_per_shard, steps), _SUBLANE)
    n_blocks = num_shards * steps

    # Never let a block *start* past the end of the (padded) array: a partial
    # overhang is fine (masked in-kernel), a fully out-of-bounds block is not.
    rows = max(rows, (n_blocks - 1) * tile_rows + _SUBLANE)
    padded_n = rows * _LANE
    needs_mask = n_blocks * tile_rows > rows

    def prep(a):
        if padded_n != n:
            # Pad only to the 16x128 sublane boundary; zeros contribute 0 KL.
            a = jnp.pad(a, (0, padded_n - n))
        return a.reshape(rows, _LANE)   # keep input dtype; upcast in-kernel

    args = [prep(a) for a in (mu_q, sigma_q, mu_p, sigma_p)]

    in_spec = pl.BlockSpec((tile_rows, _LANE), lambda c, i: (c * steps + i, 0))
    kernel = _make_kernel(n, steps, tile_rows, needs_mask)

    partials = pl.pallas_call(
        kernel,
        out_shape=jax.ShapeDtypeStruct((num_shards, _LANE), jnp.float32),
        grid_spec=pltpu.PrefetchScalarGridSpec(
            num_scalar_prefetch=0,
            grid=(num_shards, steps),
            in_specs=[in_spec, in_spec, in_spec, in_spec],
            out_specs=pl.BlockSpec((1, _LANE), lambda c, i: (c, 0)),
        ),
        compiler_params=pltpu.CompilerParams(
            dimension_semantics=("parallel", "arbitrary")),
    )(*args)
    # Sum the tiny (num_shards, 128) lane-partials in the wrapper.
    return jnp.sum(partials)


def _kld_ref(mu_q, sigma_q, mu_p, sigma_p):
    """Pure-jnp closed-form diagonal-Gaussian KL (reduction='sum')."""
    mu_q = mu_q.astype(jnp.float32)
    mu_p = mu_p.astype(jnp.float32)
    sigma_q = sigma_q.astype(jnp.float32)
    sigma_p = sigma_p.astype(jnp.float32)
    diff = mu_q - mu_p
    return 0.5 * jnp.sum(sigma_q - sigma_p + jnp.exp(sigma_p - sigma_q)
                         + diff * diff * jnp.exp(-sigma_q) - 1.0)


def kld_loss(mu_q, sigma_q, mu_p, sigma_p, *, min_pallas_elems=_PALLAS_MIN_ELEMS):
    """Equivalent of KLDLoss(reduction='sum')(mu_q, sigma_q, mu_p, sigma_p)
    for 1-D inputs of shape (N,). Returns a scalar float32."""
    assert mu_q.shape == sigma_q.shape == mu_p.shape == sigma_p.shape
    assert mu_q.ndim == 1
    if mu_q.shape[0] < min_pallas_elems:
        # pallas_call launch + pipeline prologue dominates at small N; the
        # fused XLA elementwise+reduce is at least as fast.
        return _kld_ref(mu_q, sigma_q, mu_p, sigma_p)
    return _kld_pallas(mu_q, sigma_q, mu_p, sigma_p)


if __name__ == "__main__":
    key = jax.random.PRNGKey(0)

    def make_inputs(key, n):
        k1, k2, k3, k4, key = jax.random.split(key, 5)
        mu_q = jax.random.normal(k1, (n,), dtype=jnp.float32)
        sigma_q = 0.5 * jax.random.normal(k2, (n,), dtype=jnp.float32)  # log-variances
        mu_p = jax.random.normal(k3, (n,), dtype=jnp.float32)
        sigma_p = 0.5 * jax.random.normal(k4, (n,), dtype=jnp.float32)  # log-variances
        return key, (mu_q, sigma_q, mu_p, sigma_p)

    ok = True

    # Force the Pallas path even at small sizes (min_pallas_elems=0):
    #   4096    -> lane/sublane aligned, single block
    #   1000    -> ragged, exercises wrapper-side boundary padding
    #   530000  -> multi-block (and multi-shard on v7x), exercises in-kernel
    #              tail masking of the grid-coverage overhang
    for n in (4096, 1000, 530_000):
        key, args = make_inputs(key, n)
        out = jax.block_until_ready(kld_loss(*args, min_pallas_elems=0))
        ref = _kld_ref(*args)
        ok = ok and bool(jnp.allclose(out, ref, rtol=1e-4, atol=1e-2))
        assert ok, (n, out, ref)

    # Default size-based dispatch (small N -> fused jnp path).
    key, args = make_inputs(key, 1000)
    out = jax.block_until_ready(kld_loss(*args))
    ref = _kld_ref(*args)
    ok = ok and bool(jnp.allclose(out, ref, rtol=1e-4, atol=1e-2))
    assert ok, (out, ref)

    print("KERNEL_OK")
</pallas_src>

<mosaic_0001>
module attributes {stable_mosaic.version = 11 : i64} {
  func.func @kernel(%arg0: i32, %arg1: i32, %arg2: memref<32x128xf32, #tpu.memory_space<vmem>>, %arg3: memref<32x128xf32, #tpu.memory_space<vmem>>, %arg4: memref<32x128xf32, #tpu.memory_space<vmem>>, %arg5: memref<32x128xf32, #tpu.memory_space<vmem>>, %arg6: memref<1x128xf32, #tpu.memory_space<vmem>>) attributes {dimension_semantics = [#tpu.dimension_semantics<parallel>, #tpu.dimension_semantics<arbitrary>], iteration_bounds = array<i64: 1, 1>, scalar_prefetch = 0 : i64, scratch_operands = 0 : i64, tpu.core_type = #tpu.core_type<tc>, window_params = [{transform_indices = @transform_0, window_bounds = array<i64: 32, 128>}, {transform_indices = @transform_1, window_bounds = array<i64: 32, 128>}, {transform_indices = @transform_2, window_bounds = array<i64: 32, 128>}, {transform_indices = @transform_3, window_bounds = array<i64: 32, 128>}, {transform_indices = @transform_4, window_bounds = array<i64: 1, 128>}]} {
    %c0_i32 = arith.constant 0 : i32
    %0 = arith.cmpi eq, %arg1, %c0_i32 : i32
    %1 = arith.extui %0 : i1 to i32
    %c0_i32_0 = arith.constant 0 : i32
    %2 = arith.cmpi ne, %1, %c0_i32_0 : i32
    scf.if %2 {
      %cst_15 = arith.constant 0.000000e+00 : f32
      %27 = vector.broadcast %cst_15 : f32 to vector<1x128xf32>
      %c0_16 = arith.constant 0 : index
      %c0_17 = arith.constant 0 : index
      %28 = vector.load %arg6[%c0_16, %c0_17] : memref<1x128xf32, #tpu.memory_space<vmem>>, vector<1x128xf32>
      tpu.vector_store %arg6[%c0_16, %c0_17], %27 {strides = array<i32>} : memref<1x128xf32, #tpu.memory_space<vmem>>, vector<1x128xf32>,
    } else {
    }
    %c0 = arith.constant 0 : index
    %c0_1 = arith.constant 0 : index
    %3 = vector.load %arg2[%c0, %c0_1] : memref<32x128xf32, #tpu.memory_space<vmem>>, vector<32x128xf32>
    %c0_2 = arith.constant 0 : index
    %c0_3 = arith.constant 0 : index
    %4 = vector.load %arg4[%c0_2, %c0_3] : memref<32x128xf32, #tpu.memory_space<vmem>>, vector<32x128xf32>
    %c0_4 = arith.constant 0 : index
    %c0_5 = arith.constant 0 : index
    %5 = vector.load %arg3[%c0_4, %c0_5] : memref<32x128xf32, #tpu.memory_space<vmem>>, vector<32x128xf32>
    %c0_6 = arith.constant 0 : index
    %c0_7 = arith.constant 0 : index
    %6 = vector.load %arg5[%c0_6, %c0_7] : memref<32x128xf32, #tpu.memory_space<vmem>>, vector<32x128xf32>
    %7 = arith.subf %3, %4 : vector<32x128xf32>
    %8 = arith.subf %5, %6 : vector<32x128xf32>
    %9 = arith.subf %6, %5 : vector<32x128xf32>
    %10 = math.exp %9 : vector<32x128xf32>
    %11 = arith.addf %8, %10 : vector<32x128xf32>
    %12 = arith.mulf %7, %7 : vector<32x128xf32>
    %cst = arith.constant 0.000000e+00 : f32
    %13 = vector.broadcast %cst : f32 to vector<32x128xf32>
    %14 = arith.subf %13, %5 : vector<32x128xf32>
    %15 = math.exp %14 : vector<32x128xf32>
    %16 = arith.mulf %12, %15 : vector<32x128xf32>
    %17 = arith.addf %11, %16 : vector<32x128xf32>
    %cst_8 = arith.constant 1.000000e+00 : f32
    %18 = vector.broadcast %cst_8 : f32 to vector<32x128xf32>
    %19 = arith.subf %17, %18 : vector<32x128xf32>
    %cst_9 = arith.constant 5.000000e-01 : f32
    %20 = vector.broadcast %cst_9 : f32 to vector<32x128xf32>
    %21 = arith.mulf %20, %19 : vector<32x128xf32>
    %c0_10 = arith.constant 0 : index
    %c0_11 = arith.constant 0 : index
    %22 = vector.load %arg6[%c0_10, %c0_11] : memref<1x128xf32, #tpu.memory_space<vmem>>, vector<1x128xf32>
    %cst_12 = arith.constant dense<0.000000e+00> : vector<128xf32>
    %23 = vector.multi_reduction <add>, %21, %cst_12 [0] : vector<32x128xf32> to vector<128xf32>
    %24 = vector.shape_cast %23 : vector<128xf32> to vector<1x128xf32>
    %25 = arith.addf %22, %24 : vector<1x128xf32>
    %c0_13 = arith.constant 0 : index
    %c0_14 = arith.constant 0 : index
    %26 = vector.load %arg6[%c0_13, %c0_14] : memref<1x128xf32, #tpu.memory_space<vmem>>, vector<1x128xf32>
    tpu.vector_store %arg6[%c0_13, %c0_14], %25 {strides = array<i32>} : memref<1x128xf32, #tpu.memory_space<vmem>>, vector<1x128xf32>,
    return
  }
  func.func @transform_0(%arg0: i32, %arg1: i32) -> (i32, i32) {
    %c1_i32 = arith.constant 1 : i32
    %0 = arith.muli %arg0, %c1_i32 : i32
    %1 = arith.addi %0, %arg1 : i32
    %c0_i32 = arith.constant 0 : i32
    %c0_i32_0 = arith.constant 0 : i32
    return %1, %c0_i32 : i32, i32
  }
  func.func @transform_1(%arg0: i32, %arg1: i32) -> (i32, i32) {
    %c1_i32 = arith.constant 1 : i32
    %0 = arith.muli %arg0, %c1_i32 : i32
    %1 = arith.addi %0, %arg1 : i32
    %c0_i32 = arith.constant 0 : i32
    %c0_i32_0 = arith.constant 0 : i32
    return %1, %c0_i32 : i32, i32
  }
  func.func @transform_2(%arg0: i32, %arg1: i32) -> (i32, i32) {
    %c1_i32 = arith.constant 1 : i32
    %0 = arith.muli %arg0, %c1_i32 : i32
    %1 = arith.addi %0, %arg1 : i32
    %c0_i32 = arith.constant 0 : i32
    %c0_i32_0 = arith.constant 0 : i32
    return %1, %c0_i32 : i32, i32
  }
  func.func @transform_3(%arg0: i32, %arg1: i32) -> (i32, i32) {
    %c1_i32 = arith.constant 1 : i32
    %0 = arith.muli %arg0, %c1_i32 : i32
    %1 = arith.addi %0, %arg1 : i32
    %c0_i32 = arith.constant 0 : i32
    %c0_i32_0 = arith.constant 0 : i32
    return %1, %c0_i32 : i32, i32
  }
  func.func @transform_4(%arg0: i32, %arg1: i32) -> (i32, i32) {
    %c0_i32 = arith.constant 0 : i32
    %c0_i32_0 = arith.constant 0 : i32
    return %arg0, %c0_i32 : i32, i32
  }
}

</mosaic_0001>

<llo_original>
// kernel: tpu_custom_call.1
$region0: #{tpu_custom_call.1}
  #allocation0 [shape = 'u32[]', space=smem, size = 0x4, offset = 0x4, fixed_abs, tag = 'smem constant byte address 0x4 - core index']
  #allocation1 [shape = 'u32[144,128]{1,0:T(1,128)}', space=vmem, size = 0x12000, scoped, tag = 'internal scratch']
  %s0 = inlined_call_operand.hbm [shape: f32[32,128], index: 0, kind: input, shape index: {}]
  %s1 = inlined_call_operand.hbm [shape: f32[32,128], index: 1, kind: input, shape index: {}]
  %s2 = inlined_call_operand.hbm [shape: f32[32,128], index: 2, kind: input, shape index: {}]
  %s3 = inlined_call_operand.hbm [shape: f32[32,128], index: 3, kind: input, shape index: {}]
  %s4 = inlined_call_operand.hbm [shape: f32[1,128], index: 4, kind: output, shape index: {}]
  %s5 = sld [smem:[#allocation0]]
  $region46: #{tpu_custom_call.1} parent=0
    _
  %s7 = ssub.s32 1, %s5
  %s8 = scalar_select 0, %s7, %s5
  $region1: #{tpu_custom_call.1} parent=0
    #allocation2 [shape = 'u8[16384]{0}', space=vmem, size = 0x4000, scoped, tag = 'input window, operand 0, single buffered']
    #allocation3 [shape = 's32[1]{0}', space=sflag, size = 0x4, scoped, tag = 'scoped memory for tpu_custom_call.1']
    #allocation4 [shape = 's32[1]{0}', space=sflag, size = 0x4, scoped, tag = 'scoped memory for tpu_custom_call.1']
    #allocation5 [shape = 'u8[16384]{0}', space=vmem, size = 0x4000, scoped, tag = 'input window, operand 1, single buffered']
    #allocation6 [shape = 's32[1]{0}', space=sflag, size = 0x4, scoped, tag = 'scoped memory for tpu_custom_call.1']
    #allocation7 [shape = 'u8[16384]{0}', space=vmem, size = 0x4000, scoped, tag = 'input window, operand 2, single buffered']
    #allocation8 [shape = 'u8[16384]{0}', space=vmem, size = 0x4000, scoped, tag = 'input window, operand 3, single buffered']
    #allocation9 [shape = 's32[1]{0}', space=sflag, size = 0x4, scoped, tag = 'scoped memory for tpu_custom_call.1']
    #allocation10 [shape = 'u8[512]{0}', space=vmem, size = 0x400, scoped, tag = 'output window, operand 0, single buffered']
    %9 = vsyncpa [#allocation3], 0
    %10 = vsyncpa [#allocation6], 0
    %11 = vsyncpa [#allocation9], 0
    %12 = vsyncpa [#allocation4], 0
    // Predicated region
    $region2: #{tpu_custom_call.1} parent=1 // pred_check
      _
    $region3: #{tpu_custom_call.1} parent=1 // pred_check_branch
      %14 = sbr.rel (0) target = $region5
    $region4: #{tpu_custom_call.1} parent=1 // pred_region
      %s15 = sadd.s32 0, 0
      %s16 = smul.u32 4, %s15
      %s18 = ssub.s32 512, 512
      %19 = vsyncadd [#allocation3], %s18
      %s20 = smul.addr %s16, 128
      %s21 = scalar_lea.hbm %s0, %s20
      %s22 = sshll.u32 [#allocation2], 4
      %s23 = int_to_ptr.vmem [resolvable:$true] %s22
      %28 = dma.hbm_to_vmem [thread:$0]  %s21, 512, %s23, [#allocation3], 128, 128, 8
    $region5: #{tpu_custom_call.1} parent=1 // pred_fallthru
      _
    // Predicated region
    $region6: #{tpu_custom_call.1} parent=1 // pred_check
      _
    $region7: #{tpu_custom_call.1} parent=1 // pred_check_branch
      %30 = sbr.rel (0) target = $region9
    $region8: #{tpu_custom_call.1} parent=1 // pred_region
      %s31 = sadd.s32 0, 0
      %s32 = smul.u32 4, %s31
      %s34 = ssub.s32 512, 512
      %35 = vsyncadd [#allocation6], %s34
      %s36 = smul.addr %s32, 128
      %s37 = scalar_lea.hbm %s1, %s36
      %s38 = sshll.u32 [#allocation5], 4
      %s39 = int_to_ptr.vmem [resolvable:$true] %s38
      %44 = dma.hbm_to_vmem [thread:$0]  %s37, 512, %s39, [#allocation6], 128, 128, 8
    $region9: #{tpu_custom_call.1} parent=1 // pred_fallthru
      _
    // Predicated region
    $region10: #{tpu_custom_call.1} parent=1 // pred_check
      _
    $region11: #{tpu_custom_call.1} parent=1 // pred_check_branch
      %46 = sbr.rel (0) target = $region13
    $region12: #{tpu_custom_call.1} parent=1 // pred_region
      %s47 = sadd.s32 0, 0
      %s48 = smul.u32 4, %s47
      %s50 = ssub.s32 512, 512
      %51 = vsyncadd [#allocation6], %s50
      %s52 = smul.addr %s48, 128
      %s53 = scalar_lea.hbm %s2, %s52
      %s54 = sshll.u32 [#allocation7], 4
      %s55 = int_to_ptr.vmem [resolvable:$true] %s54
      %60 = dma.hbm_to_vmem [thread:$0]  %s53, 512, %s55, [#allocation6], 128, 128, 8
    $region13: #{tpu_custom_call.1} parent=1 // pred_fallthru
      _
    // Predicated region
    $region14: #{tpu_custom_call.1} parent=1 // pred_check
      _
    $region15: #{tpu_custom_call.1} parent=1 // pred_check_branch
      %62 = sbr.rel (0) target = $region17
    $region16: #{tpu_custom_call.1} parent=1 // pred_region
      %s63 = sadd.s32 0, 0
      %s64 = smul.u32 4, %s63
      %s66 = ssub.s32 512, 512
      %67 = vsyncadd [#allocation9], %s66
      %s68 = smul.addr %s64, 128
      %s69 = scalar_lea.hbm %s3, %s68
      %s70 = sshll.u32 [#allocation8], 4
      %s71 = int_to_ptr.vmem [resolvable:$true] %s70
      %76 = dma.hbm_to_vmem [thread:$0]  %s69, 512, %s71, [#allocation9], 128, 128, 8
    $region17: #{tpu_custom_call.1} parent=1 // pred_fallthru
      _
    // Predicated region
    $region18: #{tpu_custom_call.1} parent=1 // pred_check
      _
    $region19: #{tpu_custom_call.1} parent=1 // pred_check_branch
      %78 = sbr.rel (0) target = $region21
    $region20: #{tpu_custom_call.1} parent=1 // pred_region
      %79 = dma.done [#allocation3], 512
    $region21: #{tpu_custom_call.1} parent=1 // pred_fallthru
      _
    // Predicated region
    $region22: #{tpu_custom_call.1} parent=1 // pred_check
      _
    $region23: #{tpu_custom_call.1} parent=1 // pred_check_branch
      %81 = sbr.rel (0) target = $region25
    $region24: #{tpu_custom_call.1} parent=1 // pred_region
      %82 = dma.done [#allocation6], 512
    $region25: #{tpu_custom_call.1} parent=1 // pred_fallthru
      _
    // Predicated region
    $region26: #{tpu_custom_call.1} parent=1 // pred_check
      _
    $region27: #{tpu_custom_call.1} parent=1 // pred_check_branch
      %84 = sbr.rel (0) target = $region29
    $region28: #{tpu_custom_call.1} parent=1 // pred_region
      %85 = dma.done [#allocation6], 512
    $region29: #{tpu_custom_call.1} parent=1 // pred_fallthru
      _
    // Predicated region
    $region30: #{tpu_custom_call.1} parent=1 // pred_check
      _
    $region31: #{tpu_custom_call.1} parent=1 // pred_check_branch
      %87 = sbr.rel (0) target = $region33
    $region32: #{tpu_custom_call.1} parent=1 // pred_region
      %88 = dma.done [#allocation9], 512
    $region33: #{tpu_custom_call.1} parent=1 // pred_fallthru
      _
    %s89 = sadd.s32 0, 0
    %s90 = smul.u32 4, %s89
    %s91 = sadd.s32 0, 0
    %s92 = smul.u32 4, %s91
    %s93 = sadd.s32 0, 0
    %s94 = smul.u32 4, %s93
    %s95 = sadd.s32 0, 0
    %s96 = smul.u32 4, %s95
    %p97 = scmp.eq.s32.totalorder 0, 0
    // Predicated region
    $region34: #{tpu_custom_call.1} parent=1 // pred_check
      %p98 = pneg %p97
    $region35: #{tpu_custom_call.1} parent=1 // pred_check_branch
      %100 = sbr.rel (%p98) target = $region37
    $region36: #{tpu_custom_call.1} parent=1 // pred_region
      %101 = vst [vmem:[#allocation10] sm:$0x1] 0.0
    $region37: #{tpu_custom_call.1} parent=1 // pred_fallthru
      _
    %v102 = vld [vmem:[#allocation2] sm:$0xff]
    %v103 = vld [vmem:[#allocation2 + $0x8] sm:$0xff]
    %v104 = vld [vmem:[#allocation2 + $0x10] sm:$0xff]
    %v105 = vld [vmem:[#allocation2 + $0x18] sm:$0xff]
    %v106 = vld [vmem:[#allocation7] sm:$0xff]
    %v107 = vld [vmem:[#allocation7 + $0x8] sm:$0xff]
    %v108 = vld [vmem:[#allocation7 + $0x10] sm:$0xff]
    %v109 = vld [vmem:[#allocation7 + $0x18] sm:$0xff]
    %v110 = vld [vmem:[#allocation5] sm:$0xff]
    %v111 = vld [vmem:[#allocation5 + $0x8] sm:$0xff]
    %v112 = vld [vmem:[#allocation5 + $0x10] sm:$0xff]
    %v113 = vld [vmem:[#allocation5 + $0x18] sm:$0xff]
    %v114 = vld [vmem:[#allocation8] sm:$0xff]
    %v115 = vld [vmem:[#allocation8 + $0x8] sm:$0xff]
    %v116 = vld [vmem:[#allocation8 + $0x10] sm:$0xff]
    %v117 = vld [vmem:[#allocation8 + $0x18] sm:$0xff]
    %v118 = vsub.f32 %v102, %v106
    %v119 = vsub.f32 %v103, %v107
    %v120 = vsub.f32 %v104, %v108
    %v121 = vsub.f32 %v105, %v109
    %v122 = vsub.f32 %v110, %v114
    %v123 = vsub.f32 %v111, %v115
    %v124 = vsub.f32 %v112, %v116
    %v125 = vsub.f32 %v113, %v117
    %v126 = vsub.f32 %v114, %v110
    %v127 = vsub.f32 %v115, %v111
    %v128 = vsub.f32 %v116, %v112
    %v129 = vsub.f32 %v117, %v113
    %v130 = vmul.f32 %v126, 1.442695
    %v131 = vpow.pop %v130
    %v132 = vmul.f32 %v127, 1.442695
    %v133 = vpow.pop %v132
    %v134 = vmul.f32 %v128, 1.442695
    %v135 = vpow.pop %v134
    %v136 = vmul.f32 %v129, 1.442695
    %v137 = vpow.pop %v136
    %v138 = vadd.f32 %v122, %v131
    %v139 = vadd.f32 %v123, %v133
    %v140 = vadd.f32 %v124, %v135
    %v141 = vadd.f32 %v125, %v137
    %v142 = vmul.f32 %v118, %v118
    %v143 = vmul.f32 %v119, %v119
    %v144 = vmul.f32 %v120, %v120
    %v145 = vmul.f32 %v121, %v121
    %v146 = vsub.f32 0.0, %v110
    %v147 = vsub.f32 0.0, %v111
    %v148 = vsub.f32 0.0, %v112
    %v149 = vsub.f32 0.0, %v113
    %v150 = vmul.f32 %v146, 1.442695
    %v151 = vpow.pop %v150
    %v152 = vmul.f32 %v147, 1.442695
    %v153 = vpow.pop %v152
    %v154 = vmul.f32 %v148, 1.442695
    %v155 = vpow.pop %v154
    %v156 = vmul.f32 %v149, 1.442695
    %v157 = vpow.pop %v156
    %v158 = vmul.f32 %v142, %v151
    %v159 = vmul.f32 %v143, %v153
    %v160 = vmul.f32 %v144, %v155
    %v161 = vmul.f32 %v145, %v157
    %v162 = vadd.f32 %v138, %v158
    %v163 = vadd.f32 %v139, %v159
    %v164 = vadd.f32 %v140, %v160
    %v165 = vadd.f32 %v141, %v161
    %v166 = vsub.f32 %v162, 1.0
    %v167 = vsub.f32 %v163, 1.0
    %v168 = vsub.f32 %v164, 1.0
    %v169 = vsub.f32 %v165, 1.0
    %v170 = vmul.f32 %v166, 0.5
    %v171 = vmul.f32 %v167, 0.5
    %v172 = vmul.f32 %v168, 0.5
    %v173 = vmul.f32 %v169, 0.5
    %v174 = vld [vmem:[#allocation10] sm:$0x1]
    %v175 = vadd.f32 %v170, %v171
    %v176 = vadd.f32 %v175, %v172
    %v177 = vadd.f32 %v176, %v173
    %v178 = vrot.slane %v177, 4
    %v179 = vadd.f32 %v177, %v178
    %v180 = vrot.slane %v179, 2
    %v181 = vadd.f32 %v179, %v180
    %v182 = vrot.slane %v181, 1
    %v183 = vadd.f32 %v181, %v182
    %v184 = vadd.f32 %v174, %v183
    %185 = vst [vmem:[#allocation10] sm:$0x1] %v184
    // Predicated region
    $region38: #{tpu_custom_call.1} parent=1 // pred_check
      _
    $region39: #{tpu_custom_call.1} parent=1 // pred_check_branch
      %187 = sbr.rel (0) target = $region41
    $region40: #{tpu_custom_call.1} parent=1 // pred_region
      %s189 = ssub.s32 16, 16
      %190 = vsyncadd [#allocation4], %s189
      %s192 = sshll.u32 [#allocation10], 4
      %s193 = int_to_ptr.vmem [resolvable:$true] %s192
      %195 = dma.vmem_to_hbm [thread:$0]  %s193, 16, %s4, [#allocation4]
    $region41: #{tpu_custom_call.1} parent=1 // pred_fallthru
      _
    // Predicated region
    $region42: #{tpu_custom_call.1} parent=1 // pred_check
      _
    $region43: #{tpu_custom_call.1} parent=1 // pred_check_branch
      %197 = sbr.rel (0) target = $region45
    $region44: #{tpu_custom_call.1} parent=1 // pred_region
      %198 = dma.done [#allocation4], 16
    $region45: #{tpu_custom_call.1} parent=1 // pred_fallthru
      _
    %199 = vsyncpa [#allocation3], 1
    %200 = vsyncpa [#allocation6], 1
    %201 = vsyncpa [#allocation9], 1
    %202 = vsyncpa [#allocation4], 1

</llo_original>
